<compile_context>
chip_gen: v7x
topology: tpu7x:2x2x1
jax: 0.10.0
libtpu: 0.0.40
codegen_flags: <defaults>
</compile_context>

<pallas_src>
import jax
import jax.numpy as jnp
from jax.experimental import pallas as pl
from jax.experimental.pallas import tpu as pltpu

EPS = 0.0          # GIN epsilon (initialized to 0, folded onto the adjacency diagonal)
CLS_PAD = 128      # lane-dense class width for the output store (sliced off after)


# ---------------------------------------------------------------------------
# Fused Pallas kernel: all GGIN layers + fc1/fc2 head, one graph per grid step
# ---------------------------------------------------------------------------
def _ggin_fused_kernel(a_ref, h0_ref, ctx_ref, w_ref, b_ref,
                       w1_ref, b1_ref, w2_ref, b2_ref, out_ref):
    a = a_ref[0]                                       # [N, N] bf16 (A + (1+eps)I)
    ctx_fixed = ctx_ref[0]                             # [1, F] f32 (pool(init)+pool(lead))
    h = h0_ref[0]                                      # [N, F] bf16
    hg = jnp.sum(h.astype(jnp.float32), axis=0, keepdims=True)   # SumPooling(inputs)

    num_layers = w_ref.shape[0]                        # static
    for l in range(num_layers):                        # short static loop, fully unrolled
        ctx = hg + ctx_fixed                           # per-layer global context [1, F]
        # neighbor sum + self term in one MXU pass (self term folded into A')
        msg = jnp.dot(a, h, preferred_element_type=jnp.float32)   # [N, F] f32
        node = (msg + ctx).astype(jnp.bfloat16)
        h_f32 = jnp.maximum(
            jnp.dot(node, w_ref[l], preferred_element_type=jnp.float32) + b_ref[l],
            0.0)                                       # Linear + ReLU (f32 accumulate)
        hg = jnp.sum(h_f32, axis=0, keepdims=True)     # SumPooling -> next h_global
        h = h_f32.astype(jnp.bfloat16)

    # head: fc2(relu(fc1(h_global)))  — fused epilogue, lane-dense [1, CLS_PAD] store
    t = jnp.maximum(
        jnp.dot(hg.astype(jnp.bfloat16), w1_ref[...],
                preferred_element_type=jnp.float32) + b1_ref[...],
        0.0)
    out_ref[0] = (jnp.dot(t.astype(jnp.bfloat16), w2_ref[...],
                          preferred_element_type=jnp.float32) + b2_ref[...])


# ---------------------------------------------------------------------------
# One-time parameter preparation (hoisted out of the forward path)
# ---------------------------------------------------------------------------
def prepare_params(layer_params, fc1, fc2):
    """Stack / cast / pad parameters once; reuse for every forward call."""
    num_classes = fc2[0].shape[1]
    assert num_classes <= CLS_PAD, "num_classes must be <= 128 for this output tiling"
    w_stack = jnp.stack([w for w, _ in layer_params]).astype(jnp.bfloat16)   # [L, F, F]
    b_stack = jnp.stack([b for _, b in layer_params]).astype(jnp.float32)    # [L, 1, F]
    w1 = fc1[0].astype(jnp.bfloat16)                                         # [F, F]
    b1 = fc1[1].astype(jnp.float32)                                          # [1, F]
    w2 = jnp.pad(fc2[0], ((0, 0), (0, CLS_PAD - num_classes))).astype(jnp.bfloat16)
    b2 = jnp.pad(fc2[1], ((0, 0), (0, CLS_PAD - num_classes))).astype(jnp.float32)
    return dict(w_stack=w_stack, b_stack=b_stack, w1=w1, b1=b1, w2=w2, b2=b2,
                num_classes=num_classes)


# ---------------------------------------------------------------------------
# Batched forward: grid=(B,) over graphs, weights held VMEM-resident
# ---------------------------------------------------------------------------
def ggin_forward(adj_batch, inputs_batch, initial_feats_batch, lead_feats_batch,
                 params):
    """Mirror of GGIN.forward, batched over B independent graphs.

    adj_batch:            [B, N, N]   dense adjacency (no self loops)
    inputs_batch:         [B, N, F]   node features of g
    initial_feats_batch:  [B, Ni, F]  node features of g_initial
    lead_feats_batch:     [B, Nl, F]  node features of g_lead
    returns:              [B, num_classes]
    """
    b_sz, n, f = inputs_batch.shape
    w_stack = params["w_stack"]
    num_layers = w_stack.shape[0]
    assert f == w_stack.shape[1], "GGIN context add requires in_feats == h_feats"

    # Per-call data prep (cheap): fold (1+eps)*I into A, pool the fixed contexts.
    eye = (1.0 + EPS) * jnp.eye(n, dtype=jnp.float32)
    adj_p = (adj_batch.astype(jnp.float32) + eye[None]).astype(jnp.bfloat16)   # [B, N, N]
    h0 = inputs_batch.astype(jnp.bfloat16)                                     # [B, N, F]
    ctx_fixed = (jnp.sum(initial_feats_batch, axis=1, keepdims=True) +
                 jnp.sum(lead_feats_batch, axis=1, keepdims=True)).astype(jnp.float32)

    out = pl.pallas_call(
        _ggin_fused_kernel,
        grid=(b_sz,),
        in_specs=[
            pl.BlockSpec((1, n, n), lambda b: (b, 0, 0)),                 # adj (per graph)
            pl.BlockSpec((1, n, f), lambda b: (b, 0, 0)),                 # h0  (per graph)
            pl.BlockSpec((1, 1, f), lambda b: (b, 0, 0)),                 # ctx (per graph)
            pl.BlockSpec((num_layers, f, f), lambda b: (0, 0, 0)),        # w_stack (resident)
            pl.BlockSpec((num_layers, 1, f), lambda b: (0, 0, 0)),        # b_stack (resident)
            pl.BlockSpec((f, f), lambda b: (0, 0)),                       # fc1 W
            pl.BlockSpec((1, f), lambda b: (0, 0)),                       # fc1 b
            pl.BlockSpec((f, CLS_PAD), lambda b: (0, 0)),                 # fc2 W (lane-padded)
            pl.BlockSpec((1, CLS_PAD), lambda b: (0, 0)),                 # fc2 b (lane-padded)
        ],
        out_specs=pl.BlockSpec((1, 1, CLS_PAD), lambda b: (b, 0, 0)),
        out_shape=jax.ShapeDtypeStruct((b_sz, 1, CLS_PAD), jnp.float32),
        compiler_params=pltpu.CompilerParams(
            dimension_semantics=("parallel",)),   # batch axis: megacore / pipelined
    )(adj_p, h0, ctx_fixed, params["w_stack"], params["b_stack"],
      params["w1"], params["b1"], params["w2"], params["b2"])

    return out[:, 0, :params["num_classes"]]


# ---------------------------------------------------------------------------
# Deterministic parameter init (PyTorch-Linear-style uniform, weights [in, out])
# ---------------------------------------------------------------------------
def _linear_init(key, fan_in, fan_out):
    kw, kb = jax.random.split(key)
    bound = 1.0 / jnp.sqrt(fan_in)
    w = jax.random.uniform(kw, (fan_in, fan_out), jnp.float32, -bound, bound)
    b = jax.random.uniform(kb, (1, fan_out), jnp.float32, -bound, bound)
    return w, b


if __name__ == "__main__":
    # small, self-consistent sizes
    BATCH = 2         # graphs per batch (grid axis, parallel)
    N_NODES = 8       # nodes in each g
    N_INIT = 8        # nodes in each g_initial
    N_LEAD = 8        # nodes in each g_lead
    IN_FEATS = 32     # == h_feats (see TODO above)
    H_FEATS = 32
    NUM_LAYERS = 2
    NUM_CLASSES = 4

    key = jax.random.PRNGKey(0)
    k_adj, k_x, k_init, k_lead, k_p = jax.random.split(key, 5)

    # dense symmetric adjacencies (no self loops) for each graph g
    a = (jax.random.uniform(k_adj, (BATCH, N_NODES, N_NODES)) > 0.5).astype(jnp.float32)
    adj = jnp.triu(a, 1)
    adj = adj + jnp.swapaxes(adj, -1, -2)

    inputs = jax.random.normal(k_x, (BATCH, N_NODES, IN_FEATS), jnp.float32)
    initial_feats = jax.random.normal(k_init, (BATCH, N_INIT, IN_FEATS), jnp.float32)
    lead_feats = jax.random.normal(k_lead, (BATCH, N_LEAD, IN_FEATS), jnp.float32)

    # parameters (built once, padded/stacked/cast once)
    p_keys = jax.random.split(k_p, NUM_LAYERS + 2)
    layer_params = []
    fan_in = IN_FEATS
    for li in range(NUM_LAYERS):
        layer_params.append(_linear_init(p_keys[li], fan_in, H_FEATS))
        fan_in = H_FEATS
    fc1 = _linear_init(p_keys[NUM_LAYERS], H_FEATS, H_FEATS)
    fc2 = _linear_init(p_keys[NUM_LAYERS + 1], H_FEATS, NUM_CLASSES)
    params = prepare_params(layer_params, fc1, fc2)

    out = ggin_forward(adj, inputs, initial_feats, lead_feats, params)
    out = jax.block_until_ready(out)
    assert out.shape == (BATCH, NUM_CLASSES) and out.dtype == jnp.float32
    print("KERNEL_OK")
</pallas_src>

<mosaic_0001>
module attributes {stable_mosaic.version = 11 : i64} {
  func.func @_ggin_fused_kernel(%arg0: i32, %arg1: memref<1x8x8xbf16, #tpu.memory_space<vmem>>, %arg2: memref<1x8x32xbf16, #tpu.memory_space<vmem>>, %arg3: memref<1x1x32xf32, #tpu.memory_space<vmem>>, %arg4: memref<2x32x32xbf16, #tpu.memory_space<vmem>>, %arg5: memref<2x1x32xf32, #tpu.memory_space<vmem>>, %arg6: memref<32x32xbf16, #tpu.memory_space<vmem>>, %arg7: memref<1x32xf32, #tpu.memory_space<vmem>>, %arg8: memref<32x128xbf16, #tpu.memory_space<vmem>>, %arg9: memref<1x128xf32, #tpu.memory_space<vmem>>, %arg10: memref<1x1x128xf32, #tpu.memory_space<vmem>>) attributes {dimension_semantics = [#tpu.dimension_semantics<parallel>], iteration_bounds = array<i64: 2>, scalar_prefetch = 0 : i64, scratch_operands = 0 : i64, tpu.core_type = #tpu.core_type<tc>, window_params = [{transform_indices = @transform_0, window_bounds = array<i64: 1, 8, 8>}, {transform_indices = @transform_1, window_bounds = array<i64: 1, 8, 32>}, {transform_indices = @transform_2, window_bounds = array<i64: 1, 1, 32>}, {pipeline_mode = #tpu.pipeline_mode<synchronous>, transform_indices = @transform_3, window_bounds = array<i64: 2, 32, 32>}, {pipeline_mode = #tpu.pipeline_mode<synchronous>, transform_indices = @transform_4, window_bounds = array<i64: 2, 1, 32>}, {pipeline_mode = #tpu.pipeline_mode<synchronous>, transform_indices = @transform_5, window_bounds = array<i64: 32, 32>}, {pipeline_mode = #tpu.pipeline_mode<synchronous>, transform_indices = @transform_6, window_bounds = array<i64: 1, 32>}, {pipeline_mode = #tpu.pipeline_mode<synchronous>, transform_indices = @transform_7, window_bounds = array<i64: 32, 128>}, {pipeline_mode = #tpu.pipeline_mode<synchronous>, transform_indices = @transform_8, window_bounds = array<i64: 1, 128>}, {transform_indices = @transform_9, window_bounds = array<i64: 1, 1, 128>}]} {
    %c0 = arith.constant 0 : index
    %c0_0 = arith.constant 0 : index
    %c0_1 = arith.constant 0 : index
    %0 = vector.load %arg1[%c0, %c0_0, %c0_1] : memref<1x8x8xbf16, #tpu.memory_space<vmem>>, vector<1x8x8xbf16>
    %1 = vector.shape_cast %0 : vector<1x8x8xbf16> to vector<8x8xbf16>
    %c0_2 = arith.constant 0 : index
    %c0_3 = arith.constant 0 : index
    %c0_4 = arith.constant 0 : index
    %2 = vector.load %arg3[%c0_2, %c0_3, %c0_4] : memref<1x1x32xf32, #tpu.memory_space<vmem>>, vector<1x1x32xf32>
    %3 = vector.shape_cast %2 : vector<1x1x32xf32> to vector<1x32xf32>
    %c0_5 = arith.constant 0 : index
    %c0_6 = arith.constant 0 : index
    %c0_7 = arith.constant 0 : index
    %4 = vector.load %arg2[%c0_5, %c0_6, %c0_7] : memref<1x8x32xbf16, #tpu.memory_space<vmem>>, vector<1x8x32xbf16>
    %5 = vector.shape_cast %4 : vector<1x8x32xbf16> to vector<8x32xbf16>
    %6 = arith.extf %5 : vector<8x32xbf16> to vector<8x32xf32>
    %cst = arith.constant dense<0.000000e+00> : vector<32xf32>
    %7 = vector.multi_reduction <add>, %6, %cst [0] : vector<8x32xf32> to vector<32xf32>
    %8 = vector.shape_cast %7 : vector<32xf32> to vector<1x32xf32>
    %9 = arith.addf %8, %3 : vector<1x32xf32>
    %cst_8 = arith.constant dense<0.000000e+00> : vector<8x32xf32>
    %10 = tpu.matmul %1, %5, %cst_8 {dimension_numbers = #tpu.dot_dimension_numbers<[1], [0], [0], [1], [0, 0, 1, 1], [], []>} : vector<8x8xbf16>, vector<8x32xbf16>, vector<8x32xf32> -> vector<8x32xf32>
    %11 = vector.broadcast %9 : vector<1x32xf32> to vector<8x32xf32>
    %12 = arith.addf %10, %11 : vector<8x32xf32>
    %13 = arith.truncf %12 : vector<8x32xf32> to vector<8x32xbf16>
    %c0_9 = arith.constant 0 : index
    %c0_10 = arith.constant 0 : index
    %c0_11 = arith.constant 0 : index
    %14 = vector.load %arg4[%c0_9, %c0_10, %c0_11] : memref<2x32x32xbf16, #tpu.memory_space<vmem>>, vector<1x32x32xbf16>
    %15 = vector.shape_cast %14 : vector<1x32x32xbf16> to vector<32x32xbf16>
    %cst_12 = arith.constant dense<0.000000e+00> : vector<8x32xf32>
    %16 = tpu.matmul %13, %15, %cst_12 {dimension_numbers = #tpu.dot_dimension_numbers<[1], [0], [0], [1], [0, 0, 1, 1], [], []>} : vector<8x32xbf16>, vector<32x32xbf16>, vector<8x32xf32> -> vector<8x32xf32>
    %c0_13 = arith.constant 0 : index
    %c0_14 = arith.constant 0 : index
    %c0_15 = arith.constant 0 : index
    %17 = vector.load %arg5[%c0_13, %c0_14, %c0_15] : memref<2x1x32xf32, #tpu.memory_space<vmem>>, vector<1x1x32xf32>
    %18 = vector.shape_cast %17 : vector<1x1x32xf32> to vector<1x32xf32>
    %19 = vector.broadcast %18 : vector<1x32xf32> to vector<8x32xf32>
    %20 = arith.addf %16, %19 : vector<8x32xf32>
    %cst_16 = arith.constant 0.000000e+00 : f32
    %21 = vector.broadcast %cst_16 : f32 to vector<8x32xf32>
    %22 = arith.maximumf %20, %21 : vector<8x32xf32>
    %cst_17 = arith.constant dense<0.000000e+00> : vector<32xf32>
    %23 = vector.multi_reduction <add>, %22, %cst_17 [0] : vector<8x32xf32> to vector<32xf32>
    %24 = vector.shape_cast %23 : vector<32xf32> to vector<1x32xf32>
    %25 = arith.truncf %22 : vector<8x32xf32> to vector<8x32xbf16>
    %26 = arith.addf %24, %3 : vector<1x32xf32>
    %cst_18 = arith.constant dense<0.000000e+00> : vector<8x32xf32>
    %27 = tpu.matmul %1, %25, %cst_18 {dimension_numbers = #tpu.dot_dimension_numbers<[1], [0], [0], [1], [0, 0, 1, 1], [], []>} : vector<8x8xbf16>, vector<8x32xbf16>, vector<8x32xf32> -> vector<8x32xf32>
    %28 = vector.broadcast %26 : vector<1x32xf32> to vector<8x32xf32>
    %29 = arith.addf %27, %28 : vector<8x32xf32>
    %30 = arith.truncf %29 : vector<8x32xf32> to vector<8x32xbf16>
    %c1 = arith.constant 1 : index
    %c0_19 = arith.constant 0 : index
    %c0_20 = arith.constant 0 : index
    %31 = vector.load %arg4[%c1, %c0_19, %c0_20] : memref<2x32x32xbf16, #tpu.memory_space<vmem>>, vector<1x32x32xbf16>
    %32 = vector.shape_cast %31 : vector<1x32x32xbf16> to vector<32x32xbf16>
    %cst_21 = arith.constant dense<0.000000e+00> : vector<8x32xf32>
    %33 = tpu.matmul %30, %32, %cst_21 {dimension_numbers = #tpu.dot_dimension_numbers<[1], [0], [0], [1], [0, 0, 1, 1], [], []>} : vector<8x32xbf16>, vector<32x32xbf16>, vector<8x32xf32> -> vector<8x32xf32>
    %c1_22 = arith.constant 1 : index
    %c0_23 = arith.constant 0 : index
    %c0_24 = arith.constant 0 : index
    %34 = vector.load %arg5[%c1_22, %c0_23, %c0_24] : memref<2x1x32xf32, #tpu.memory_space<vmem>>, vector<1x1x32xf32>
    %35 = vector.shape_cast %34 : vector<1x1x32xf32> to vector<1x32xf32>
    %36 = vector.broadcast %35 : vector<1x32xf32> to vector<8x32xf32>
    %37 = arith.addf %33, %36 : vector<8x32xf32>
    %cst_25 = arith.constant 0.000000e+00 : f32
    %38 = vector.broadcast %cst_25 : f32 to vector<8x32xf32>
    %39 = arith.maximumf %37, %38 : vector<8x32xf32>
    %cst_26 = arith.constant dense<0.000000e+00> : vector<32xf32>
    %40 = vector.multi_reduction <add>, %39, %cst_26 [0] : vector<8x32xf32> to vector<32xf32>
    %41 = vector.shape_cast %40 : vector<32xf32> to vector<1x32xf32>
    %42 = arith.truncf %41 : vector<1x32xf32> to vector<1x32xbf16>
    %c0_27 = arith.constant 0 : index
    %c0_28 = arith.constant 0 : index
    %43 = vector.load %arg6[%c0_27, %c0_28] : memref<32x32xbf16, #tpu.memory_space<vmem>>, vector<32x32xbf16>
    %cst_29 = arith.constant dense<0.000000e+00> : vector<1x32xf32>
    %44 = tpu.matmul %42, %43, %cst_29 {dimension_numbers = #tpu.dot_dimension_numbers<[1], [0], [0], [1], [0, 0, 1, 1], [], []>} : vector<1x32xbf16>, vector<32x32xbf16>, vector<1x32xf32> -> vector<1x32xf32>
    %c0_30 = arith.constant 0 : index
    %c0_31 = arith.constant 0 : index
    %45 = vector.load %arg7[%c0_30, %c0_31] : memref<1x32xf32, #tpu.memory_space<vmem>>, vector<1x32xf32>
    %46 = arith.addf %44, %45 : vector<1x32xf32>
    %cst_32 = arith.constant 0.000000e+00 : f32
    %47 = vector.broadcast %cst_32 : f32 to vector<1x32xf32>
    %48 = arith.maximumf %46, %47 : vector<1x32xf32>
    %49 = arith.truncf %48 : vector<1x32xf32> to vector<1x32xbf16>
    %c0_33 = arith.constant 0 : index
    %c0_34 = arith.constant 0 : index
    %50 = vector.load %arg8[%c0_33, %c0_34] : memref<32x128xbf16, #tpu.memory_space<vmem>>, vector<32x128xbf16>
    %cst_35 = arith.constant dense<0.000000e+00> : vector<1x128xf32>
    %51 = tpu.matmul %49, %50, %cst_35 {dimension_numbers = #tpu.dot_dimension_numbers<[1], [0], [0], [1], [0, 0, 1, 1], [], []>} : vector<1x32xbf16>, vector<32x128xbf16>, vector<1x128xf32> -> vector<1x128xf32>
    %c0_36 = arith.constant 0 : index
    %c0_37 = arith.constant 0 : index
    %52 = vector.load %arg9[%c0_36, %c0_37] : memref<1x128xf32, #tpu.memory_space<vmem>>, vector<1x128xf32>
    %53 = arith.addf %51, %52 : vector<1x128xf32>
    %c0_38 = arith.constant 0 : index
    %c0_39 = arith.constant 0 : index
    %c0_40 = arith.constant 0 : index
    %54 = vector.load %arg10[%c0_38, %c0_39, %c0_40] : memref<1x1x128xf32, #tpu.memory_space<vmem>>, vector<1x1x128xf32>
    %55 = vector.shape_cast %54 : vector<1x1x128xf32> to vector<1x128xf32>
    %56 = vector.shape_cast %53 : vector<1x128xf32> to vector<1x1x128xf32>
    tpu.vector_store %arg10[%c0_38, %c0_39, %c0_40], %56 {strides = array<i32>} : memref<1x1x128xf32, #tpu.memory_space<vmem>>, vector<1x1x128xf32>,
    return
  }
  func.func @transform_0(%arg0: i32) -> (i32, i32, i32) {
    %c0_i32 = arith.constant 0 : i32
    %c0_i32_0 = arith.constant 0 : i32
    %c0_i32_1 = arith.constant 0 : i32
    return %arg0, %c0_i32, %c0_i32_0 : i32, i32, i32
  }
  func.func @transform_1(%arg0: i32) -> (i32, i32, i32) {
    %c0_i32 = arith.constant 0 : i32
    %c0_i32_0 = arith.constant 0 : i32
    %c0_i32_1 = arith.constant 0 : i32
    return %arg0, %c0_i32, %c0_i32_0 : i32, i32, i32
  }
  func.func @transform_2(%arg0: i32) -> (i32, i32, i32) {
    %c0_i32 = arith.constant 0 : i32
    %c0_i32_0 = arith.constant 0 : i32
    %c0_i32_1 = arith.constant 0 : i32
    return %arg0, %c0_i32, %c0_i32_0 : i32, i32, i32
  }
  func.func @transform_3(%arg0: i32) -> (i32, i32, i32) {
    %c0_i32 = arith.constant 0 : i32
    %c0_i32_0 = arith.constant 0 : i32
    %c0_i32_1 = arith.constant 0 : i32
    %c0_i32_2 = arith.constant 0 : i32
    return %c0_i32, %c0_i32_0, %c0_i32_1 : i32, i32, i32
  }
  func.func @transform_4(%arg0: i32) -> (i32, i32, i32) {
    %c0_i32 = arith.constant 0 : i32
    %c0_i32_0 = arith.constant 0 : i32
    %c0_i32_1 = arith.constant 0 : i32
    %c0_i32_2 = arith.constant 0 : i32
    return %c0_i32, %c0_i32_0, %c0_i32_1 : i32, i32, i32
  }
  func.func @transform_5(%arg0: i32) -> (i32, i32) {
    %c0_i32 = arith.constant 0 : i32
    %c0_i32_0 = arith.constant 0 : i32
    %c0_i32_1 = arith.constant 0 : i32
    return %c0_i32, %c0_i32_0 : i32, i32
  }
  func.func @transform_6(%arg0: i32) -> (i32, i32) {
    %c0_i32 = arith.constant 0 : i32
    %c0_i32_0 = arith.constant 0 : i32
    %c0_i32_1 = arith.constant 0 : i32
    return %c0_i32, %c0_i32_0 : i32, i32
  }
  func.func @transform_7(%arg0: i32) -> (i32, i32) {
    %c0_i32 = arith.constant 0 : i32
    %c0_i32_0 = arith.constant 0 : i32
    %c0_i32_1 = arith.constant 0 : i32
    return %c0_i32, %c0_i32_0 : i32, i32
  }
  func.func @transform_8(%arg0: i32) -> (i32, i32) {
    %c0_i32 = arith.constant 0 : i32
    %c0_i32_0 = arith.constant 0 : i32
    %c0_i32_1 = arith.constant 0 : i32
    return %c0_i32, %c0_i32_0 : i32, i32
  }
  func.func @transform_9(%arg0: i32) -> (i32, i32, i32) {
    %c0_i32 = arith.constant 0 : i32
    %c0_i32_0 = arith.constant 0 : i32
    %c0_i32_1 = arith.constant 0 : i32
    return %arg0, %c0_i32, %c0_i32_0 : i32, i32, i32
  }
}

</mosaic_0001>

<llo_original>
// kernel: tpu_custom_call.1
$region0: #{tpu_custom_call.1}
  #allocation0 [shape = 'u32[]', space=smem, size = 0x4, offset = 0x4, fixed_abs, tag = 'smem constant byte address 0x4 - core index']
  #allocation1 [shape = 'u32[144,128]{1,0:T(1,128)}', space=vmem, size = 0x12000, scoped, tag = 'internal scratch']
  %s0 = inlined_call_operand.hbm [shape: bf16[2,8,8], index: 0, kind: input, shape index: {}]
  %s1 = inlined_call_operand.hbm [shape: bf16[2,8,32], index: 1, kind: input, shape index: {}]
  %s2 = inlined_call_operand.vmem [shape: f32[2,1,32], index: 2, kind: input, shape index: {}]
  %s3 = inlined_call_operand.hbm [shape: bf16[2,32,32], index: 3, kind: input, shape index: {}]
  %s4 = inlined_call_operand.hbm [shape: f32[2,1,32], index: 4, kind: input, shape index: {}]
  %s5 = inlined_call_operand.vmem [shape: bf16[32,32], index: 5, kind: input, shape index: {}]
  %s6 = inlined_call_operand.vmem [shape: f32[1,32], index: 6, kind: input, shape index: {}]
  %s7 = inlined_call_operand.hbm [shape: bf16[32,128], index: 7, kind: input, shape index: {}]
  %s8 = inlined_call_operand.vmem [shape: f32[1,128], index: 8, kind: input, shape index: {}]
  %s9 = inlined_call_operand.hbm [shape: f32[2,1,128], index: 9, kind: output, shape index: {}]
  %s10 = sld [smem:[#allocation0]]
  $region89: #{tpu_custom_call.1} parent=0
    _
  %s12 = ssub.s32 1, %s10
  %s13 = scalar_select 0, %s12, %s10
  $region1: #{tpu_custom_call.1} parent=0
    #allocation2 [shape = 'u8[4096]{0}', space=vmem, size = 0x1000, scoped, tag = 'input window, operand 0']
    #allocation3 [shape = 's32[2]{0}', space=sflag, size = 0x8, scoped, tag = 'scoped memory for tpu_custom_call.1']
    #allocation4 [shape = 's32[2]{0}', space=sflag, size = 0x8, scoped, tag = 'scoped memory for tpu_custom_call.1']
    #allocation5 [shape = 'u8[4096]{0}', space=vmem, size = 0x1000, scoped, tag = 'input window, operand 1']
    #allocation6 [shape = 's32[2]{0}', space=sflag, size = 0x8, scoped, tag = 'scoped memory for tpu_custom_call.1']
    #allocation7 [shape = 'u8[16384]{0}', space=vmem, size = 0x4000, scoped, tag = 'input window, operand 3, single buffered']
    #allocation8 [shape = 'u8[1024]{0}', space=vmem, size = 0x400, scoped, tag = 'input window, operand 4, single buffered']
    #allocation9 [shape = 's32[1]{0}', space=sflag, size = 0x4, scoped, tag = 'scoped memory for tpu_custom_call.1']
    #allocation10 [shape = 'u8[8192]{0}', space=vmem, size = 0x2000, scoped, tag = 'input window, operand 7, single buffered']
    #allocation11 [shape = 'u8[1024]{0}', space=vmem, size = 0x400, scoped, tag = 'output window, operand 0']
    %14 = vsyncpa [#allocation3], 0
    %s15 = scalar_lea.sflag [#allocation3], 1
    %16 = vsyncpa %s15, 0
    %17 = vsyncpa [#allocation6], 0
    %s18 = scalar_lea.sflag [#allocation6], 1
    %19 = vsyncpa %s18, 0
    %20 = vsyncpa [#allocation9], 0
    %21 = vsyncpa [#allocation4], 0
    %s22 = scalar_lea.sflag [#allocation4], 1
    %23 = vsyncpa %s22, 0
    loop: start=0, step=1, limit=4
    $region2: #{tpu_custom_call.1} parent=1 // loop_pre_header
      _
    $region3: #{tpu_custom_call.1} parent=1 // loop_header
      %s25 = sphi 0, %s29
      %p26 = scmp.ge.s32.totalorder %s25, 4
      %s35 = sphi 0, %s37
      %s38 = sphi 0, %s35
      %s39 = sphi 0, %s38
      %s55 = sphi 0, %s39
      %s61 = sphi 0, %s63
      %s64 = sphi 0, %s61
      %s65 = sphi 0, %s64
      %s81 = sphi 0, %s65
      %s87 = sphi 0, %s89
      %s90 = sphi 0, %s87
      %s91 = sphi 0, %s90
      %s107 = sphi 0, %s91
      %s111 = sphi 0, %s111
      %s113 = sphi 0, %s111
      %s114 = sphi 0, %s113
      %s128 = sphi 0, %s114
      %s132 = sphi 0, %s132
      %s134 = sphi 0, %s132
      %s135 = sphi 0, %s134
      %s149 = sphi 0, %s135
      %s153 = sphi 0, %s153
      %s155 = sphi 0, %s153
      %s156 = sphi 0, %s155
      %s170 = sphi 0, %s156
      %s174 = sphi 0, %s174
      %s176 = sphi 0, %s174
      %s177 = sphi 0, %s176
      %s191 = sphi 0, %s177
      %s195 = sphi 0, %s195
      %s197 = sphi 0, %s195
      %s198 = sphi 0, %s197
      %s212 = sphi 0, %s198
      %s216 = sphi 0, %s216
      %s218 = sphi 0, %s216
      %s219 = sphi 0, %s218
      %s233 = sphi 0, %s219
      %s239 = sphi 0, %s241
      %s242 = sphi 0, %s239
      %s243 = sphi 0, %s242
      %s259 = sphi 0, %s243
    $region4: #{tpu_custom_call.1} parent=1 // loop_header_branch
      %28 = sbr.rel (%p26) target = $region8
    $region5: #{tpu_custom_call.1} parent=1 // loop_body
      %s30 = ssub.s32 %s25, 1
      %s31 = ssub.s32 %s25, 2
      %s32 = sadd.s32 %s25, 1
      %s33 = ssub.s32 %s25, %s32
      %p34 = scmp.eq.s32.totalorder %s33, 0
      %s36 = sadd.s32 %s35, 1
      %s37 = scalar_select %p34, %s35, %s36
      %p40 = pneg %p34
      %p41 = scmp.eq.s32.totalorder %s25, 1
      %p42 = por %p40, %p41
      %p43 = scmp.ne.s32.totalorder %s35, %s38
      %p44 = scmp.eq.s32.totalorder %s25, 0
      %p45 = por %p43, %p44
      %p46 = scmp.ne.s32.totalorder %s35, %s38
      %p47 = scmp.eq.s32.totalorder %s30, 1
      %p48 = por %p46, %p47
      %p49 = scmp.ne.s32.totalorder %s38, %s39
      %p50 = scmp.eq.s32.totalorder %s30, 0
      %p51 = por %p49, %p50
      %p52 = scmp.ne.s32.totalorder %s38, %s39
      %p53 = scmp.eq.s32.totalorder %s31, 1
      %p54 = por %p52, %p53
      %p56 = scmp.ne.s32.totalorder %s39, %s55
      %p57 = scmp.eq.s32.totalorder %s31, 0
      %p58 = por %p56, %p57
      %s59 = ssub.s32 %s25, %s32
      %p60 = scmp.eq.s32.totalorder %s59, 0
      %s62 = sadd.s32 %s61, 1
      %s63 = scalar_select %p60, %s61, %s62
      %p66 = pneg %p60
      %p67 = scmp.eq.s32.totalorder %s25, 1
      %p68 = por %p66, %p67
      %p69 = scmp.ne.s32.totalorder %s61, %s64
      %p70 = scmp.eq.s32.totalorder %s25, 0
      %p71 = por %p69, %p70
      %p72 = scmp.ne.s32.totalorder %s61, %s64
      %p73 = scmp.eq.s32.totalorder %s30, 1
      %p74 = por %p72, %p73
      %p75 = scmp.ne.s32.totalorder %s64, %s65
      %p76 = scmp.eq.s32.totalorder %s30, 0
      %p77 = por %p75, %p76
      %p78 = scmp.ne.s32.totalorder %s64, %s65
      %p79 = scmp.eq.s32.totalorder %s31, 1
      %p80 = por %p78, %p79
      %p82 = scmp.ne.s32.totalorder %s65, %s81
      %p83 = scmp.eq.s32.totalorder %s31, 0
      %p84 = por %p82, %p83
      %s85 = ssub.s32 %s25, %s32
      %p86 = scmp.eq.s32.totalorder %s85, 0
      %s88 = sadd.s32 %s87, 1
      %s89 = scalar_select %p86, %s87, %s88
      %p92 = pneg %p86
      %p93 = scmp.eq.s32.totalorder %s25, 1
      %p94 = por %p92, %p93
      %p95 = scmp.ne.s32.totalorder %s87, %s90
      %p96 = scmp.eq.s32.totalorder %s25, 0
      %p97 = por %p95, %p96
      %p98 = scmp.ne.s32.totalorder %s87, %s90
      %p99 = scmp.eq.s32.totalorder %s30, 1
      %p100 = por %p98, %p99
      %p101 = scmp.ne.s32.totalorder %s90, %s91
      %p102 = scmp.eq.s32.totalorder %s30, 0
      %p103 = por %p101, %p102
      %p104 = scmp.ne.s32.totalorder %s90, %s91
      %p105 = scmp.eq.s32.totalorder %s31, 1
      %p106 = por %p104, %p105
      %p108 = scmp.ne.s32.totalorder %s91, %s107
      %p109 = scmp.eq.s32.totalorder %s31, 0
      %p110 = por %p108, %p109
      %s112 = sadd.s32 %s111, 1
      %p115 = scmp.eq.s32.totalorder %s25, 1
      %p116 = scmp.ne.s32.totalorder %s111, %s113
      %p117 = scmp.eq.s32.totalorder %s25, 0
      %p118 = por %p116, %p117
      %p119 = scmp.ne.s32.totalorder %s111, %s113
      %p120 = scmp.eq.s32.totalorder %s30, 1
      %p121 = por %p119, %p120
      %p122 = scmp.ne.s32.totalorder %s113, %s114
      %p123 = scmp.eq.s32.totalorder %s30, 0
      %p124 = por %p122, %p123
      %p125 = scmp.ne.s32.totalorder %s113, %s114
      %p126 = scmp.eq.s32.totalorder %s31, 1
      %p127 = por %p125, %p126
      %p129 = scmp.ne.s32.totalorder %s114, %s128
      %p130 = scmp.eq.s32.totalorder %s31, 0
      %p131 = por %p129, %p130
      %s133 = sadd.s32 %s132, 1
      %p136 = scmp.eq.s32.totalorder %s25, 1
      %p137 = scmp.ne.s32.totalorder %s132, %s134
      %p138 = scmp.eq.s32.totalorder %s25, 0
      %p139 = por %p137, %p138
      %p140 = scmp.ne.s32.totalorder %s132, %s134
      %p141 = scmp.eq.s32.totalorder %s30, 1
      %p142 = por %p140, %p141
      %p143 = scmp.ne.s32.totalorder %s134, %s135
      %p144 = scmp.eq.s32.totalorder %s30, 0
      %p145 = por %p143, %p144
      %p146 = scmp.ne.s32.totalorder %s134, %s135
      %p147 = scmp.eq.s32.totalorder %s31, 1
      %p148 = por %p146, %p147
      %p150 = scmp.ne.s32.totalorder %s135, %s149
      %p151 = scmp.eq.s32.totalorder %s31, 0
      %p152 = por %p150, %p151
      %s154 = sadd.s32 %s153, 1
      %p157 = scmp.eq.s32.totalorder %s25, 1
      %p158 = scmp.ne.s32.totalorder %s153, %s155
      %p159 = scmp.eq.s32.totalorder %s25, 0
      %p160 = por %p158, %p159
      %p161 = scmp.ne.s32.totalorder %s153, %s155
      %p162 = scmp.eq.s32.totalorder %s30, 1
      %p163 = por %p161, %p162
      %p164 = scmp.ne.s32.totalorder %s155, %s156
      %p165 = scmp.eq.s32.totalorder %s30, 0
      %p166 = por %p164, %p165
      %p167 = scmp.ne.s32.totalorder %s155, %s156
      %p168 = scmp.eq.s32.totalorder %s31, 1
      %p169 = por %p167, %p168
      %p171 = scmp.ne.s32.totalorder %s156, %s170
      %p172 = scmp.eq.s32.totalorder %s31, 0
      %p173 = por %p171, %p172
      %s175 = sadd.s32 %s174, 1
      %p178 = scmp.eq.s32.totalorder %s25, 1
      %p179 = scmp.ne.s32.totalorder %s174, %s176
      %p180 = scmp.eq.s32.totalorder %s25, 0
      %p181 = por %p179, %p180
      %p182 = scmp.ne.s32.totalorder %s174, %s176
      %p183 = scmp.eq.s32.totalorder %s30, 1
      %p184 = por %p182, %p183
      %p185 = scmp.ne.s32.totalorder %s176, %s177
      %p186 = scmp.eq.s32.totalorder %s30, 0
      %p187 = por %p185, %p186
      %p188 = scmp.ne.s32.totalorder %s176, %s177
      %p189 = scmp.eq.s32.totalorder %s31, 1
      %p190 = por %p188, %p189
      %p192 = scmp.ne.s32.totalorder %s177, %s191
      %p193 = scmp.eq.s32.totalorder %s31, 0
      %p194 = por %p192, %p193
      %s196 = sadd.s32 %s195, 1
      %p199 = scmp.eq.s32.totalorder %s25, 1
      %p200 = scmp.ne.s32.totalorder %s195, %s197
      %p201 = scmp.eq.s32.totalorder %s25, 0
      %p202 = por %p200, %p201
      %p203 = scmp.ne.s32.totalorder %s195, %s197
      %p204 = scmp.eq.s32.totalorder %s30, 1
      %p205 = por %p203, %p204
      %p206 = scmp.ne.s32.totalorder %s197, %s198
      %p207 = scmp.eq.s32.totalorder %s30, 0
      %p208 = por %p206, %p207
      %p209 = scmp.ne.s32.totalorder %s197, %s198
      %p210 = scmp.eq.s32.totalorder %s31, 1
      %p211 = por %p209, %p210
      %p213 = scmp.ne.s32.totalorder %s198, %s212
      %p214 = scmp.eq.s32.totalorder %s31, 0
      %p215 = por %p213, %p214
      %s217 = sadd.s32 %s216, 1
      %p220 = scmp.eq.s32.totalorder %s25, 1
      %p221 = scmp.ne.s32.totalorder %s216, %s218
      %p222 = scmp.eq.s32.totalorder %s25, 0
      %p223 = por %p221, %p222
      %p224 = scmp.ne.s32.totalorder %s216, %s218
      %p225 = scmp.eq.s32.totalorder %s30, 1
      %p226 = por %p224, %p225
      %p227 = scmp.ne.s32.totalorder %s218, %s219
      %p228 = scmp.eq.s32.totalorder %s30, 0
      %p229 = por %p227, %p228
      %p230 = scmp.ne.s32.totalorder %s218, %s219
      %p231 = scmp.eq.s32.totalorder %s31, 1
      %p232 = por %p230, %p231
      %p234 = scmp.ne.s32.totalorder %s219, %s233
      %p235 = scmp.eq.s32.totalorder %s31, 0
      %p236 = por %p234, %p235
      %s237 = ssub.s32 %s25, %s32
      %p238 = scmp.eq.s32.totalorder %s237, 0
      %s240 = sadd.s32 %s239, 1
      %s241 = scalar_select %p238, %s239, %s240
      %p244 = pneg %p238
      %p245 = scmp.eq.s32.totalorder %s25, 1
      %p246 = por %p244, %p245
      %p247 = scmp.ne.s32.totalorder %s239, %s242
      %p248 = scmp.eq.s32.totalorder %s25, 0
      %p249 = por %p247, %p248
      %p250 = scmp.ne.s32.totalorder %s239, %s242
      %p251 = scmp.eq.s32.totalorder %s30, 1
      %p252 = por %p250, %p251
      %p253 = scmp.ne.s32.totalorder %s242, %s243
      %p254 = scmp.eq.s32.totalorder %s30, 0
      %p255 = por %p253, %p254
      %p256 = scmp.ne.s32.totalorder %s242, %s243
      %p257 = scmp.eq.s32.totalorder %s31, 1
      %p258 = por %p256, %p257
      %p260 = scmp.ne.s32.totalorder %s243, %s259
      %p261 = scmp.eq.s32.totalorder %s31, 0
      %p262 = por %p260, %p261
      %p263 = scmp.le.s32.totalorder 1, %s25
      %p264 = scmp.lt.s32.totalorder %s25, 3
      %p265 = pnand %p263, %p264
      %p266 = pneg %p265
      // Predicated region
      $region9: #{tpu_custom_call.1} parent=5 // pred_check
        _
      $region10: #{tpu_custom_call.1} parent=5 // pred_check_branch
        %268 = sbr.rel (%p265) target = $region12
      $region11: #{tpu_custom_call.1} parent=5 // pred_region
        %s269 = ssub.s32 %s25, 1
        // Predicated region
        $region13: #{tpu_custom_call.1} parent=11 // pred_check
          %p270 = pneg %p124
        $region14: #{tpu_custom_call.1} parent=11 // pred_check_branch
          %272 = sbr.rel (%p270) target = $region16
        $region15: #{tpu_custom_call.1} parent=11 // pred_region
          %s274 = ssub.s32 512, 512
          %275 = vsyncadd [#allocation6], %s274
          %s276 = sshll.u32 [#allocation7], 4
          %s277 = int_to_ptr.vmem [resolvable:$true] %s276
          %282 = dma.hbm_to_vmem [thread:$0]  %s3, 512, %s277, [#allocation6], 64, 64, 4
        $region16: #{tpu_custom_call.1} parent=11 // pred_fallthru
          _
        // Predicated region
        $region17: #{tpu_custom_call.1} parent=11 // pred_check
          %p283 = pneg %p145
        $region18: #{tpu_custom_call.1} parent=11 // pred_check_branch
          %285 = sbr.rel (%p283) target = $region20
        $region19: #{tpu_custom_call.1} parent=11 // pred_region
          %s287 = ssub.s32 32, 32
          %288 = vsyncadd [#allocation9], %s287
          %s289 = sshll.u32 [#allocation8], 4
          %s290 = int_to_ptr.vmem [resolvable:$true] %s289
          %295 = dma.hbm_to_vmem [thread:$0]  %s4, 32, %s290, [#allocation9], 16, 16, 1
        $region20: #{tpu_custom_call.1} parent=11 // pred_fallthru
          _
        // Predicated region
        $region21: #{tpu_custom_call.1} parent=11 // pred_check
          %p296 = pneg %p166
        $region22: #{tpu_custom_call.1} parent=11 // pred_check_branch
          %298 = sbr.rel (%p296) target = $region24
        $region23: #{tpu_custom_call.1} parent=11 // pred_region
          _
        $region24: #{tpu_custom_call.1} parent=11 // pred_fallthru
          _
        // Predicated region
        $region25: #{tpu_custom_call.1} parent=11 // pred_check
          %p299 = pneg %p187
        $region26: #{tpu_custom_call.1} parent=11 // pred_check_branch
          %301 = sbr.rel (%p299) target = $region28
        $region27: #{tpu_custom_call.1} parent=11 // pred_region
          _
        $region28: #{tpu_custom_call.1} parent=11 // pred_fallthru
          _
        // Predicated region
        $region29: #{tpu_custom_call.1} parent=11 // pred_check
          %p302 = pneg %p208
        $region30: #{tpu_custom_call.1} parent=11 // pred_check_branch
          %304 = sbr.rel (%p302) target = $region32
        $region31: #{tpu_custom_call.1} parent=11 // pred_region
          %s306 = ssub.s32 256, 256
          %307 = vsyncadd [#allocation9], %s306
          %s308 = sshll.u32 [#allocation10], 4
          %s309 = int_to_ptr.vmem [resolvable:$true] %s308
          %314 = dma.hbm_to_vmem [thread:$0]  %s7, 256, %s309, [#allocation9], 64, 64, 4
        $region32: #{tpu_custom_call.1} parent=11 // pred_fallthru
          _
        // Predicated region
        $region33: #{tpu_custom_call.1} parent=11 // pred_check
          %p315 = pneg %p229
        $region34: #{tpu_custom_call.1} parent=11 // pred_check_branch
          %317 = sbr.rel (%p315) target = $region36
        $region35: #{tpu_custom_call.1} parent=11 // pred_region
          _
        $region36: #{tpu_custom_call.1} parent=11 // pred_fallthru
          _
      $region12: #{tpu_custom_call.1} parent=5 // pred_fallthru
        _
      %p318 = scmp.lt.s32.totalorder %s25, 2
      // Predicated region
      $region37: #{tpu_custom_call.1} parent=5 // pred_check
        %p319 = pneg %p318
      $region38: #{tpu_custom_call.1} parent=5 // pred_check_branch
        %321 = sbr.rel (%p319) target = $region40
      $region39: #{tpu_custom_call.1} parent=5 // pred_region
        // Predicated region
        $region41: #{tpu_custom_call.1} parent=39 // pred_check
          %p322 = pneg %p45
        $region42: #{tpu_custom_call.1} parent=39 // pred_check_branch
          %324 = sbr.rel (%p322) target = $region44
        $region43: #{tpu_custom_call.1} parent=39 // pred_region
          %s325 = sand.u32 %s35, 1
          %s326 = scalar_lea.sflag [#allocation3], %s325
          %s327 = sand.u32 %s35, 1
          %s328 = smul.addr %s327, 4
          %s329 = scalar_lea.vmem [#allocation2], %s328
          %s331 = ssub.s32 64, 64
          %332 = vsyncadd %s326, %s331
          %s333 = smul.addr %s25, 64
          %s334 = scalar_lea.hbm %s0, %s333
          %s336 = sshll.u32 %s329, 4
          %s337 = int_to_ptr.vmem [resolvable:$true] %s336
          %339 = dma.hbm_to_vmem [thread:$0]  %s334, 64, %s337, %s326
        $region44: #{tpu_custom_call.1} parent=39 // pred_fallthru
          _
        // Predicated region
        $region45: #{tpu_custom_call.1} parent=39 // pred_check
          %p340 = pneg %p71
        $region46: #{tpu_custom_call.1} parent=39 // pred_check_branch
          %342 = sbr.rel (%p340) target = $region48
        $region47: #{tpu_custom_call.1} parent=39 // pred_region
          %s343 = sand.u32 %s25, 1
          %s344 = scalar_lea.sflag [#allocation6], %s343
          %s345 = sand.u32 %s61, 1
          %s346 = smul.addr %s345, 4
          %s347 = scalar_lea.vmem [#allocation5], %s346
          %s349 = ssub.s32 64, 64
          %350 = vsyncadd %s344, %s349
          %s351 = smul.addr %s25, 64
          %s352 = scalar_lea.hbm %s1, %s351
          %s354 = sshll.u32 %s347, 4
          %s355 = int_to_ptr.vmem [resolvable:$true] %s354
          %357 = dma.hbm_to_vmem [thread:$0]  %s352, 64, %s355, %s344
        $region48: #{tpu_custom_call.1} parent=39 // pred_fallthru
          _
        // Predicated region
        $region49: #{tpu_custom_call.1} parent=39 // pred_check
          %p358 = pneg %p97
        $region50: #{tpu_custom_call.1} parent=39 // pred_check_branch
          %360 = sbr.rel (%p358) target = $region52
        $region51: #{tpu_custom_call.1} parent=39 // pred_region
          %p361 = scmp.lt.s32.totalorder %s25, 1
          %s362 = scalar_select %p361, %s25, 1
          %s363 = scalar_lea.vmem %s2, %s362
        $region52: #{tpu_custom_call.1} parent=39 // pred_fallthru
          _
      $region40: #{tpu_custom_call.1} parent=5 // pred_fallthru
        _
      %p364 = scmp.le.s32.totalorder 1, %s25
      %p365 = scmp.lt.s32.totalorder %s25, 3
      %p366 = pnand %p364, %p365
      %p367 = pneg %p366
      // Predicated region
      $region53: #{tpu_custom_call.1} parent=5 // pred_check
        _
      $region54: #{tpu_custom_call.1} parent=5 // pred_check_branch
        %369 = sbr.rel (%p366) target = $region56
      $region55: #{tpu_custom_call.1} parent=5 // pred_region
        %s370 = ssub.s32 %s25, 1
        %s371 = sand.u32 %s38, 1
        %s372 = scalar_lea.sflag [#allocation3], %s371
        %s373 = sand.u32 %s38, 1
        %s374 = smul.addr %s373, 4
        %s375 = scalar_lea.vmem [#allocation2], %s374
        // Predicated region
        $region57: #{tpu_custom_call.1} parent=55 // pred_check
          %p376 = pneg %p51
        $region58: #{tpu_custom_call.1} parent=55 // pred_check_branch
          %378 = sbr.rel (%p376) target = $region60
        $region59: #{tpu_custom_call.1} parent=55 // pred_region
          %379 = dma.done %s372, 64
        $region60: #{tpu_custom_call.1} parent=55 // pred_fallthru
          _
        %s380 = sand.u32 %s30, 1
        %s381 = scalar_lea.sflag [#allocation6], %s380
        %s382 = sand.u32 %s64, 1
        %s383 = smul.addr %s382, 4
        %s384 = scalar_lea.vmem [#allocation5], %s383
        // Predicated region
        $region61: #{tpu_custom_call.1} parent=55 // pred_check
          %p385 = pneg %p77
        $region62: #{tpu_custom_call.1} parent=55 // pred_check_branch
          %387 = sbr.rel (%p385) target = $region64
        $region63: #{tpu_custom_call.1} parent=55 // pred_region
          %388 = dma.done %s381, 64
        $region64: #{tpu_custom_call.1} parent=55 // pred_fallthru
          _
        // Predicated region
        $region65: #{tpu_custom_call.1} parent=55 // pred_check
          %p389 = pneg %p124
        $region66: #{tpu_custom_call.1} parent=55 // pred_check_branch
          %391 = sbr.rel (%p389) target = $region68
        $region67: #{tpu_custom_call.1} parent=55 // pred_region
          %392 = dma.done [#allocation6], 512
        $region68: #{tpu_custom_call.1} parent=55 // pred_fallthru
          _
        // Predicated region
        $region69: #{tpu_custom_call.1} parent=55 // pred_check
          %p393 = pneg %p145
        $region70: #{tpu_custom_call.1} parent=55 // pred_check_branch
          %395 = sbr.rel (%p393) target = $region72
        $region71: #{tpu_custom_call.1} parent=55 // pred_region
          %396 = dma.done [#allocation9], 32
        $region72: #{tpu_custom_call.1} parent=55 // pred_fallthru
          _
        // Predicated region
        $region73: #{tpu_custom_call.1} parent=55 // pred_check
          %p397 = pneg %p208
        $region74: #{tpu_custom_call.1} parent=55 // pred_check_branch
          %399 = sbr.rel (%p397) target = $region76
        $region75: #{tpu_custom_call.1} parent=55 // pred_region
          %400 = dma.done [#allocation9], 256
        $region76: #{tpu_custom_call.1} parent=55 // pred_fallthru
          _
        %s401 = sand.u32 %s38, 1
        %s402 = scalar_lea.sflag [#allocation3], %s401
        %s403 = sand.u32 %s38, 1
        %s404 = smul.addr %s403, 4
        %s405 = scalar_lea.vmem [#allocation2], %s404
        %p406 = pneg %p51
        %p407 = pneg %p48
        %s408 = sand.u32 %s30, 1
        %s409 = scalar_lea.sflag [#allocation6], %s408
        %s410 = sand.u32 %s64, 1
        %s411 = smul.addr %s410, 4
        %s412 = scalar_lea.vmem [#allocation5], %s411
        %p413 = pneg %p77
        %p414 = pneg %p74
        %p415 = scmp.lt.s32.totalorder %s30, 1
        %s416 = scalar_select %p415, %s30, 1
        %s417 = scalar_lea.vmem %s2, %s416
        %p418 = pneg %p103
        %p419 = pneg %p100
        %p420 = pneg %p124
        %p421 = pneg %p121
        %p422 = pneg %p145
        %p423 = pneg %p142
        %p424 = pneg %p166
        %p425 = pneg %p163
        %p426 = pneg %p187
        %p427 = pneg %p184
        %p428 = pneg %p208
        %p429 = pneg %p205
        %p430 = pneg %p229
        %p431 = pneg %p226
        %p432 = pneg %p255
        %p433 = pneg %p252
        %s434 = sand.u32 %s242, 1
        %s435 = scalar_lea.sflag [#allocation4], %s434
        %s436 = sand.u32 %s242, 1
        %s437 = scalar_lea.vmem [#allocation11], %s436
        %p438 = scmp.lt.s32.totalorder %s30, 1
        %s439 = scalar_select %p438, %s30, 1
        %s440 = scalar_lea.vmem %s2, %s439
        %v442 = vld [vmem:[%s375] sm:$0xf]
        %v443 = vld [vmem:[%s440] sm:$0x1]
        %v444 = vld [vmem:[%s384] sm:$0xf]
        %v445 = vunpack.c.l.bf16 %v444
        %vm446 = vcmask 261120
        %v447 = vsel %vm446, %v445, 0.0
        %v448 = vrot.slane %v447, 4
        %v449 = vadd.f32 %v447, %v448
        %v450 = vrot.slane %v449, 2
        %v451 = vadd.f32 %v449, %v450
        %v452 = vrot.slane %v451, 1
        %v453 = vadd.f32 %v451, %v452
        %v454 = vadd.f32 %v453, %v443
        %v455 = vlaneseq
        %v456 = vshrl.u32 %v455, 7
        %v457 = vsub.s32 0, %v456
        %v458 = vrot.slane %v454, %v457
        %vm459 = vcmask 64512
        %v461 = vsel %vm459, %v442, 0
        %vm463 = vcmask 1043456
        %v465 = vsel %vm463, %v444, 0
        %467 = vmatprep.subr.bf16.mxu0 0
        %468 = vmatpush1.bf16.msra.mxu0 %v465
        %469 = vmatprep.subr.bf16.mxu0 0
        %470 = vmatpush1.bf16.msra.mxu0 0
        %471 = vmatprep.subr.bf16.mxu0 0
        %472 = vmatpush1.bf16.msra.mxu0 0
        %473 = vmatprep.subr.bf16.mxu0 0
        %474 = vmatpush1.bf16.msra.mxu0 0
        %475 = vmatprep.subr.bf16.mxu0 0
        %476 = vmatpush1.bf16.msra.mxu0 0
        %477 = vmatprep.subr.bf16.mxu0 0
        %478 = vmatpush1.bf16.msra.mxu0 0
        %479 = vmatprep.subr.bf16.mxu0 0
        %480 = vmatpush1.bf16.msra.mxu0 0
        %481 = vmatprep.subr.bf16.mxu0 0
        %482 = vmatpush1.bf16.msra.mxu0 0
        %483 = vmatprep.subr.bf16.mxu0 0
        %484 = vmatpush1.bf16.msra.mxu0 0
        %485 = vmatprep.subr.bf16.mxu0 0
        %486 = vmatpush1.bf16.msra.mxu0 0
        %487 = vmatprep.subr.bf16.mxu0 0
        %488 = vmatpush1.bf16.msra.mxu0 0
        %489 = vmatprep.subr.bf16.mxu0 0
        %490 = vmatpush1.bf16.msra.mxu0 0
        %491 = vmatprep.subr.bf16.mxu0 0
        %492 = vmatpush1.bf16.msra.mxu0 0
        %493 = vmatprep.subr.bf16.mxu0 0
        %494 = vmatpush1.bf16.msra.mxu0 0
        %495 = vmatprep.subr.bf16.mxu0 0
        %496 = vmatpush1.bf16.msra.mxu0 0
        %497 = vmatprep.subr.bf16.mxu0 0
        %498 = vmatpush1.bf16.msra.mxu0 0
        %499 = vmatprep.mubr.bf16.mxu0 0
        %500 = vmatmul.mubr.bf16.gmra.mrb[0].mxu0 %v461
        %v501 = vpop.f32.mrb[0].mxu0
        %v502 = vadd.f32 %v458, %v501
        %v503 = vpop.f32.mrb[0].mxu0
        %v504 = vpop.f32.mrb[0].mxu0
        %v505 = vpop.f32.mrb[0].mxu0
        %506 = vdwg.mxu0
        %v507 = vpack.c.bf16 %v502, %v502
        %v508 = vld [vmem:[#allocation7] sm:$0xf]
        %v509 = vld [vmem:[#allocation7 + $0x4] sm:$0xf]
        %v510 = vld [vmem:[#allocation7 + $0x8] sm:$0xf]
        %v511 = vld [vmem:[#allocation7 + $0xc] sm:$0xf]
        %v512 = vld [vmem:[#allocation8] sm:$0x1]
        %v514 = vlaneseq
        %v515 = vshrl.u32 %v514, 7
        %v516 = vsub.s32 0, %v515
        %v517 = vrot.slane %v512, %v516
        %v523 = vunpack.c.l.b16 %v508
        %v524 = vunpack.c.l.b16 %v509
        %v525 = vunpack.c.l.b16 %v510
        %v526 = vunpack.c.l.b16 %v511
        %v527 = vpack.c.b16 %v524, %v523
        %v528 = vpack.c.b16 %v526, %v525
        %v532 = vsel %vm446, %v507, 0
        %534 = vmatprep.subr.bf16.mxu0 0
        %535 = vmatpush1.bf16.msra.mxu0 %v527
        %536 = vmatprep.subr.bf16.mxu0 0
        %537 = vmatpush1.bf16.msra.mxu0 %v528
        %538 = vmatprep.subr.bf16.mxu0 0
        %539 = vmatpush1.bf16.msra.mxu0 0
        %540 = vmatprep.subr.bf16.mxu0 0
        %541 = vmatpush1.bf16.msra.mxu0 0
        %542 = vmatprep.subr.bf16.mxu0 0
        %543 = vmatpush1.bf16.msra.mxu0 0
        %544 = vmatprep.subr.bf16.mxu0 0
        %545 = vmatpush1.bf16.msra.mxu0 0
        %546 = vmatprep.subr.bf16.mxu0 0
        %547 = vmatpush1.bf16.msra.mxu0 0
        %548 = vmatprep.subr.bf16.mxu0 0
        %549 = vmatpush1.bf16.msra.mxu0 0
        %550 = vmatprep.subr.bf16.mxu0 0
        %551 = vmatpush1.bf16.msra.mxu0 0
        %552 = vmatprep.subr.bf16.mxu0 0
        %553 = vmatpush1.bf16.msra.mxu0 0
        %554 = vmatprep.subr.bf16.mxu0 0
        %555 = vmatpush1.bf16.msra.mxu0 0
        %556 = vmatprep.subr.bf16.mxu0 0
        %557 = vmatpush1.bf16.msra.mxu0 0
        %558 = vmatprep.subr.bf16.mxu0 0
        %559 = vmatpush1.bf16.msra.mxu0 0
        %560 = vmatprep.subr.bf16.mxu0 0
        %561 = vmatpush1.bf16.msra.mxu0 0
        %562 = vmatprep.subr.bf16.mxu0 0
        %563 = vmatpush1.bf16.msra.mxu0 0
        %564 = vmatprep.subr.bf16.mxu0 0
        %565 = vmatpush1.bf16.msra.mxu0 0
        %566 = vmatprep.mubr.bf16.mxu0 0
        %567 = vmatmul.mubr.bf16.gmra.mrb[0].mxu0 %v532
        %v568 = vpop.f32.mrb[0].mxu0
        %v569 = vadd.f32 %v517, %v568
        %v570 = vpop.f32.mrb[0].mxu0
        %v571 = vpop.f32.mrb[0].mxu0
        %v572 = vpop.f32.mrb[0].mxu0
        %573 = vdwg.mxu0
        %v574 = vmax.f32 %v569, 0.0
        %v575 = vsel %vm446, %v574, 0.0
        %v576 = vrot.slane %v575, 4
        %v577 = vadd.f32 %v575, %v576
        %v578 = vrot.slane %v577, 2
        %v579 = vadd.f32 %v577, %v578
        %v580 = vrot.slane %v579, 1
        %v581 = vadd.f32 %v579, %v580
        %v582 = vpack.c.bf16 %v574, %v574
        %v583 = vadd.f32 %v581, %v443
        %v584 = vlaneseq
        %v585 = vshrl.u32 %v584, 7
        %v586 = vsub.s32 0, %v585
        %v587 = vrot.slane %v583, %v586
        %v589 = vsel %vm463, %v582, 0
        %591 = vmatprep.subr.bf16.mxu0 0
        %592 = vmatpush1.bf16.msra.mxu0 %v589
        %593 = vmatprep.subr.bf16.mxu0 0
        %594 = vmatpush1.bf16.msra.mxu0 0
        %595 = vmatprep.subr.bf16.mxu0 0
        %596 = vmatpush1.bf16.msra.mxu0 0
        %597 = vmatprep.subr.bf16.mxu0 0
        %598 = vmatpush1.bf16.msra.mxu0 0
        %599 = vmatprep.subr.bf16.mxu0 0
        %600 = vmatpush1.bf16.msra.mxu0 0
        %601 = vmatprep.subr.bf16.mxu0 0
        %602 = vmatpush1.bf16.msra.mxu0 0
        %603 = vmatprep.subr.bf16.mxu0 0
        %604 = vmatpush1.bf16.msra.mxu0 0
        %605 = vmatprep.subr.bf16.mxu0 0
        %606 = vmatpush1.bf16.msra.mxu0 0
        %607 = vmatprep.subr.bf16.mxu0 0
        %608 = vmatpush1.bf16.msra.mxu0 0
        %609 = vmatprep.subr.bf16.mxu0 0
        %610 = vmatpush1.bf16.msra.mxu0 0
        %611 = vmatprep.subr.bf16.mxu0 0
        %612 = vmatpush1.bf16.msra.mxu0 0
        %613 = vmatprep.subr.bf16.mxu0 0
        %614 = vmatpush1.bf16.msra.mxu0 0
        %615 = vmatprep.subr.bf16.mxu0 0
        %616 = vmatpush1.bf16.msra.mxu0 0
        %617 = vmatprep.subr.bf16.mxu0 0
        %618 = vmatpush1.bf16.msra.mxu0 0
        %619 = vmatprep.subr.bf16.mxu0 0
        %620 = vmatpush1.bf16.msra.mxu0 0
        %621 = vmatprep.subr.bf16.mxu0 0
        %622 = vmatpush1.bf16.msra.mxu0 0
        %623 = vmatprep.mubr.bf16.mxu0 0
        %624 = vmatmul.mubr.bf16.gmra.mrb[0].mxu0 %v461
        %v625 = vpop.f32.mrb[0].mxu0
        %v626 = vadd.f32 %v587, %v625
        %v627 = vpop.f32.mrb[0].mxu0
        %v628 = vpop.f32.mrb[0].mxu0
        %v629 = vpop.f32.mrb[0].mxu0
        %630 = vdwg.mxu0
        %v631 = vpack.c.bf16 %v626, %v626
        %s632 = scalar_lea.vmem [#allocation7], 16
        %v633 = vld [vmem:[%s632] sm:$0xf]
        %v634 = vld [vmem:[%s632 + $0x4] sm:$0xf]
        %v635 = vld [vmem:[%s632 + $0x8] sm:$0xf]
        %v636 = vld [vmem:[%s632 + $0xc] sm:$0xf]
        %s637 = scalar_lea.vmem [#allocation8], 1
        %v638 = vld [vmem:[%s637] sm:$0x1]
        %v640 = vlaneseq
        %v641 = vshrl.u32 %v640, 7
        %v642 = vsub.s32 0, %v641
        %v643 = vrot.slane %v638, %v642
        %v649 = vunpack.c.l.b16 %v633
        %v650 = vunpack.c.l.b16 %v634
        %v651 = vunpack.c.l.b16 %v635
        %v652 = vunpack.c.l.b16 %v636
        %v653 = vpack.c.b16 %v650, %v649
        %v654 = vpack.c.b16 %v652, %v651
        %v658 = vsel %vm446, %v631, 0
        %660 = vmatprep.subr.bf16.mxu0 0
        %661 = vmatpush1.bf16.msra.mxu0 %v653
        %662 = vmatprep.subr.bf16.mxu0 0
        %663 = vmatpush1.bf16.msra.mxu0 %v654
        %664 = vmatprep.subr.bf16.mxu0 0
        %665 = vmatpush1.bf16.msra.mxu0 0
        %666 = vmatprep.subr.bf16.mxu0 0
        %667 = vmatpush1.bf16.msra.mxu0 0
        %668 = vmatprep.subr.bf16.mxu0 0
        %669 = vmatpush1.bf16.msra.mxu0 0
        %670 = vmatprep.subr.bf16.mxu0 0
        %671 = vmatpush1.bf16.msra.mxu0 0
        %672 = vmatprep.subr.bf16.mxu0 0
        %673 = vmatpush1.bf16.msra.mxu0 0
        %674 = vmatprep.subr.bf16.mxu0 0
        %675 = vmatpush1.bf16.msra.mxu0 0
        %676 = vmatprep.subr.bf16.mxu0 0
        %677 = vmatpush1.bf16.msra.mxu0 0
        %678 = vmatprep.subr.bf16.mxu0 0
        %679 = vmatpush1.bf16.msra.mxu0 0
        %680 = vmatprep.subr.bf16.mxu0 0
        %681 = vmatpush1.bf16.msra.mxu0 0
        %682 = vmatprep.subr.bf16.mxu0 0
        %683 = vmatpush1.bf16.msra.mxu0 0
        %684 = vmatprep.subr.bf16.mxu0 0
        %685 = vmatpush1.bf16.msra.mxu0 0
        %686 = vmatprep.subr.bf16.mxu0 0
        %687 = vmatpush1.bf16.msra.mxu0 0
        %688 = vmatprep.subr.bf16.mxu0 0
        %689 = vmatpush1.bf16.msra.mxu0 0
        %690 = vmatprep.subr.bf16.mxu0 0
        %691 = vmatpush1.bf16.msra.mxu0 0
        %692 = vmatprep.mubr.bf16.mxu0 0
        %693 = vmatmul.mubr.bf16.gmra.mrb[0].mxu0 %v658
        %v694 = vpop.f32.mrb[0].mxu0
        %v695 = vadd.f32 %v643, %v694
        %v696 = vpop.f32.mrb[0].mxu0
        %v697 = vpop.f32.mrb[0].mxu0
        %v698 = vpop.f32.mrb[0].mxu0
        %699 = vdwg.mxu0
        %v700 = vmax.f32 %v695, 0.0
        %v701 = vsel %vm446, %v700, 0.0
        %v702 = vrot.slane %v701, 4
        %v703 = vadd.f32 %v701, %v702
        %v704 = vrot.slane %v703, 2
        %v705 = vadd.f32 %v703, %v704
        %v706 = vrot.slane %v705, 1
        %v707 = vadd.f32 %v705, %v706
        %v708 = vpack.c.bf16 %v707, %v707
        %v709 = vld [vmem:[%s5] sm:$0xf]
        %v710 = vld [vmem:[%s5 + $0x4] sm:$0xf]
        %v711 = vld [vmem:[%s5 + $0x8] sm:$0xf]
        %v712 = vld [vmem:[%s5 + $0xc] sm:$0xf]
        %v713 = vld [vmem:[%s6] sm:$0x1]
        %v718 = vunpack.c.l.b16 %v709
        %v719 = vunpack.c.l.b16 %v710
        %v720 = vunpack.c.l.b16 %v711
        %v721 = vunpack.c.l.b16 %v712
        %v722 = vpack.c.b16 %v719, %v718
        %v723 = vpack.c.b16 %v721, %v720
        %v727 = vsel %vm446, %v708, 0
        %729 = vmatprep.subr.bf16.mxu0 0
        %730 = vmatpush1.bf16.msra.mxu0 %v722
        %731 = vmatprep.subr.bf16.mxu0 0
        %732 = vmatpush1.bf16.msra.mxu0 %v723
        %733 = vmatprep.subr.bf16.mxu0 0
        %734 = vmatpush1.bf16.msra.mxu0 0
        %735 = vmatprep.subr.bf16.mxu0 0
        %736 = vmatpush1.bf16.msra.mxu0 0
        %737 = vmatprep.subr.bf16.mxu0 0
        %738 = vmatpush1.bf16.msra.mxu0 0
        %739 = vmatprep.subr.bf16.mxu0 0
        %740 = vmatpush1.bf16.msra.mxu0 0
        %741 = vmatprep.subr.bf16.mxu0 0
        %742 = vmatpush1.bf16.msra.mxu0 0
        %743 = vmatprep.subr.bf16.mxu0 0
        %744 = vmatpush1.bf16.msra.mxu0 0
        %745 = vmatprep.subr.bf16.mxu0 0
        %746 = vmatpush1.bf16.msra.mxu0 0
        %747 = vmatprep.subr.bf16.mxu0 0
        %748 = vmatpush1.bf16.msra.mxu0 0
        %749 = vmatprep.subr.bf16.mxu0 0
        %750 = vmatpush1.bf16.msra.mxu0 0
        %751 = vmatprep.subr.bf16.mxu0 0
        %752 = vmatpush1.bf16.msra.mxu0 0
        %753 = vmatprep.subr.bf16.mxu0 0
        %754 = vmatpush1.bf16.msra.mxu0 0
        %755 = vmatprep.subr.bf16.mxu0 0
        %756 = vmatpush1.bf16.msra.mxu0 0
        %757 = vmatprep.subr.bf16.mxu0 0
        %758 = vmatpush1.bf16.msra.mxu0 0
        %759 = vmatprep.subr.bf16.mxu0 0
        %760 = vmatpush1.bf16.msra.mxu0 0
        %761 = vmatprep.mubr.bf16.mxu0 0
        %762 = vmatmul.mubr.bf16.gmra.mrb[0].mxu0 %v727
        %v763 = vpop.f32.mrb[0].mxu0
        %v764 = vadd.f32 %v713, %v763
        %v765 = vpop.f32.mrb[0].mxu0
        %v766 = vpop.f32.mrb[0].mxu0
        %v767 = vpop.f32.mrb[0].mxu0
        %768 = vdwg.mxu0
        %v769 = vmax.f32 %v764, 0.0
        %v770 = vpack.c.bf16 %v769, %v769
        %v771 = vld [vmem:[#allocation10] sm:$0xf]
        %v772 = vld [vmem:[#allocation10 + $0x4] sm:$0xf]
        %v773 = vld [vmem:[#allocation10 + $0x8] sm:$0xf]
        %v774 = vld [vmem:[#allocation10 + $0xc] sm:$0xf]
        %v775 = vld [vmem:[%s8] sm:$0x1]
        %v780 = vunpack.c.l.b16 %v771
        %v781 = vunpack.c.l.b16 %v772
        %v782 = vunpack.c.l.b16 %v773
        %v783 = vunpack.c.l.b16 %v774
        %v784 = vpack.c.b16 %v781, %v780
        %v785 = vpack.c.b16 %v783, %v782
        %v789 = vsel %vm446, %v770, 0
        %791 = vmatprep.subr.bf16.mxu0 0
        %792 = vmatpush1.bf16.msra.mxu0 %v784
        %793 = vmatprep.subr.bf16.mxu0 0
        %794 = vmatpush1.bf16.msra.mxu0 %v785
        %795 = vmatprep.subr.bf16.mxu0 0
        %796 = vmatpush1.bf16.msra.mxu0 0
        %797 = vmatprep.subr.bf16.mxu0 0
        %798 = vmatpush1.bf16.msra.mxu0 0
        %799 = vmatprep.subr.bf16.mxu0 0
        %800 = vmatpush1.bf16.msra.mxu0 0
        %801 = vmatprep.subr.bf16.mxu0 0
        %802 = vmatpush1.bf16.msra.mxu0 0
        %803 = vmatprep.subr.bf16.mxu0 0
        %804 = vmatpush1.bf16.msra.mxu0 0
        %805 = vmatprep.subr.bf16.mxu0 0
        %806 = vmatpush1.bf16.msra.mxu0 0
        %807 = vmatprep.subr.bf16.mxu0 0
        %808 = vmatpush1.bf16.msra.mxu0 0
        %809 = vmatprep.subr.bf16.mxu0 0
        %810 = vmatpush1.bf16.msra.mxu0 0
        %811 = vmatprep.subr.bf16.mxu0 0
        %812 = vmatpush1.bf16.msra.mxu0 0
        %813 = vmatprep.subr.bf16.mxu0 0
        %814 = vmatpush1.bf16.msra.mxu0 0
        %815 = vmatprep.subr.bf16.mxu0 0
        %816 = vmatpush1.bf16.msra.mxu0 0
        %817 = vmatprep.subr.bf16.mxu0 0
        %818 = vmatpush1.bf16.msra.mxu0 0
        %819 = vmatprep.subr.bf16.mxu0 0
        %820 = vmatpush1.bf16.msra.mxu0 0
        %821 = vmatprep.subr.bf16.mxu0 0
        %822 = vmatpush1.bf16.msra.mxu0 0
        %823 = vmatprep.mubr.bf16.mxu0 0
        %824 = vmatmul.mubr.bf16.gmra.mrb[0].mxu0 %v789
        %v825 = vpop.f32.mrb[0].mxu0
        %v826 = vadd.f32 %v775, %v825
        %v827 = vpop.f32.mrb[0].mxu0
        %v828 = vpop.f32.mrb[0].mxu0
        %v829 = vpop.f32.mrb[0].mxu0
        %830 = vdwg.mxu0
        %831 = vst [vmem:[%s437] sm:$0x1] %v826
        %s832 = sand.u32 %s242, 1
        %s833 = scalar_lea.sflag [#allocation4], %s832
        %s834 = sand.u32 %s242, 1
        %s835 = scalar_lea.vmem [#allocation11], %s834
        // Predicated region
        $region77: #{tpu_custom_call.1} parent=55 // pred_check
          %p836 = pneg %p252
        $region78: #{tpu_custom_call.1} parent=55 // pred_check_branch
          %838 = sbr.rel (%p836) target = $region80
        $region79: #{tpu_custom_call.1} parent=55 // pred_region
          %s840 = ssub.s32 16, 16
          %841 = vsyncadd %s833, %s840
          %s842 = smul.addr %s30, 16
          %s843 = scalar_lea.hbm %s9, %s842
          %s845 = sshll.u32 %s835, 4
          %s846 = int_to_ptr.vmem [resolvable:$true] %s845
          %848 = dma.vmem_to_hbm [thread:$0]  %s846, 16, %s843, %s833
        $region80: #{tpu_custom_call.1} parent=55 // pred_fallthru
          _
      $region56: #{tpu_custom_call.1} parent=5 // pred_fallthru
        _
      %p849 = scmp.le.s32.totalorder 2, %s25
      // Predicated region
      $region81: #{tpu_custom_call.1} parent=5 // pred_check
        %p850 = pneg %p849
      $region82: #{tpu_custom_call.1} parent=5 // pred_check_branch
        %852 = sbr.rel (%p850) target = $region84
      $region83: #{tpu_custom_call.1} parent=5 // pred_region
        %s853 = ssub.s32 %s25, 2
        // Predicated region
        $region85: #{tpu_custom_call.1} parent=83 // pred_check
          %p854 = pneg %p258
        $region86: #{tpu_custom_call.1} parent=83 // pred_check_branch
          %856 = sbr.rel (%p854) target = $region88
        $region87: #{tpu_custom_call.1} parent=83 // pred_region
          %s857 = sand.u32 %s243, 1
          %s858 = scalar_lea.sflag [#allocation4], %s857
          %s859 = sand.u32 %s243, 1
          %s860 = scalar_lea.vmem [#allocation11], %s859
          %861 = dma.done %s858, 16
        $region88: #{tpu_custom_call.1} parent=83 // pred_fallthru
          _
      $region84: #{tpu_custom_call.1} parent=5 // pred_fallthru
        _
    $region6: #{tpu_custom_call.1} parent=1 // loop_footer
      %s29 = sadd.s32 1, %s25
    $region7: #{tpu_custom_call.1} parent=1 // loop_footer_branch
      %24 = sbr.rel target = $region3
    $region8: #{tpu_custom_call.1} parent=1 // loop_exit
      _
    %862 = vsyncpa [#allocation3], 1
    %s863 = scalar_lea.sflag [#allocation3], 1
    %864 = vsyncpa %s863, 1
    %865 = vsyncpa [#allocation6], 1
    %s866 = scalar_lea.sflag [#allocation6], 1
    %867 = vsyncpa %s866, 1
    %868 = vsyncpa [#allocation9], 1
    %869 = vsyncpa [#allocation4], 1
    %s870 = scalar_lea.sflag [#allocation4], 1
    %871 = vsyncpa %s870, 1

</llo_original>
